<compile_context>
chip_gen: v5e
topology: v5e:2x2
jax: 0.10.0
libtpu: 0.0.40
codegen_flags: <defaults>
</compile_context>

<pallas_src>
import jax
import jax.numpy as jnp
from jax.experimental import pallas as pl
from jax.experimental.pallas import tpu as pltpu

# ---- model dimensions (in_one / in_two are free hyperparams in the source) ----
IN_SHAPE = 32
IN_ONE = 64
IN_TWO = 48
ENC_SHAPE = 8
BATCH = 16
BN_EPS = 1e-5

_BIAS_WIDTHS = (IN_ONE, IN_TWO, ENC_SHAPE, IN_TWO, IN_ONE, IN_SHAPE)


def _ae_kernel(x_ref,
               w1_ref, w2_ref, w3_ref, w4_ref, w5_ref, w6_ref,
               bias_ref, o_ref):
    x = x_ref[...].astype(jnp.float32)
    b = bias_ref[...]                     # (8, 128) f32, one bias per row (zero-padded)

    # ---- encode ---- (Dropout(0.2) is identity at inference)
    h = jnp.dot(x, w1_ref[...], preferred_element_type=jnp.float32) + b[0:1, :IN_ONE]
    h = jax.nn.sigmoid(h)
    h = jnp.dot(h, w2_ref[...], preferred_element_type=jnp.float32) + b[1:2, :IN_TWO]
    h = jax.nn.sigmoid(h)
    # w3/b3 already carry the folded eval-mode BatchNorm1d affine.
    z = jnp.dot(h, w3_ref[...], preferred_element_type=jnp.float32) + b[2:3, :ENC_SHAPE]

    # ---- decode ----
    h = jnp.dot(z, w4_ref[...], preferred_element_type=jnp.float32) + b[3:4, :IN_TWO]
    h = jax.nn.sigmoid(h)
    h = jnp.dot(h, w5_ref[...], preferred_element_type=jnp.float32) + b[4:5, :IN_ONE]
    h = jax.nn.sigmoid(h)
    y = jnp.dot(h, w6_ref[...], preferred_element_type=jnp.float32) + b[5:6, :IN_SHAPE]

    o_ref[...] = y.astype(o_ref.dtype)


def _fold_and_pack(params):
    """Host-side prep: fold BN into (w3, b3) and pack all biases into one (8,128) slab."""
    scale = params["gamma"] * jax.lax.rsqrt(params["var"] + BN_EPS)   # [1, ENC_SHAPE]
    w3f = params["w3"] * scale                                        # broadcast over rows
    b3f = (params["b3"] - params["mean"]) * scale + params["beta"]

    biases = (params["b1"], params["b2"], b3f, params["b4"], params["b5"], params["b6"])
    rows = [jnp.pad(bias, ((0, 0), (0, 128 - w))) for bias, w in zip(biases, _BIAS_WIDTHS)]
    rows.append(jnp.zeros((2, 128), jnp.float32))                     # pad to 8 sublanes
    bias_pack = jnp.concatenate(rows, axis=0)                         # [8, 128]

    weights = (params["w1"], params["w2"], w3f, params["w4"], params["w5"], params["w6"])
    return weights, bias_pack


def autoencoder_forward(x, params):
    """x: [B, IN_SHAPE] float32. params: dict of pre-transposed ([in,out]) weights/biases."""
    B, F = x.shape
    assert F == IN_SHAPE

    weights, bias_pack = _fold_and_pack(params)

    def full_spec(shape):
        return pl.BlockSpec(shape, lambda i: tuple(0 for _ in shape))

    in_specs = [pl.BlockSpec((B, IN_SHAPE), lambda i: (0, 0))]
    in_specs += [full_spec(w.shape) for w in weights]
    in_specs += [full_spec(bias_pack.shape)]

    return pl.pallas_call(
        _ae_kernel,
        out_shape=jax.ShapeDtypeStruct((B, IN_SHAPE), x.dtype),
        grid_spec=pltpu.PrefetchScalarGridSpec(
            num_scalar_prefetch=0,
            grid=(1,),                       # single step: whole batch in one shot
            in_specs=in_specs,
            out_specs=pl.BlockSpec((B, IN_SHAPE), lambda i: (0, 0)),
        ),
        compiler_params=pltpu.CompilerParams(
            dimension_semantics=("arbitrary",)),
    )(x, *weights, bias_pack)


def init_params(key):
    """Deterministic init. Linear weights stored pre-transposed as [in, out]."""
    ks = jax.random.split(key, 12)

    def linear(kw, kb, fan_in, fan_out):
        bound = 1.0 / jnp.sqrt(fan_in)
        w = jax.random.uniform(kw, (fan_in, fan_out), jnp.float32, -bound, bound)
        b = jax.random.uniform(kb, (1, fan_out), jnp.float32, -bound, bound)
        return w, b

    p = {}
    p["w1"], p["b1"] = linear(ks[0], ks[1], IN_SHAPE, IN_ONE)
    p["w2"], p["b2"] = linear(ks[2], ks[3], IN_ONE, IN_TWO)
    p["w3"], p["b3"] = linear(ks[4], ks[5], IN_TWO, ENC_SHAPE)
    # BatchNorm1d(enc_shape): affine + running stats (non-trivial, deterministic)
    p["gamma"] = 1.0 + 0.1 * jax.random.normal(ks[6], (1, ENC_SHAPE), jnp.float32)
    p["beta"] = 0.1 * jax.random.normal(ks[7], (1, ENC_SHAPE), jnp.float32)
    p["mean"] = 0.05 * jax.random.normal(ks[8], (1, ENC_SHAPE), jnp.float32)
    p["var"] = 1.0 + 0.1 * jax.random.uniform(ks[9], (1, ENC_SHAPE), jnp.float32)
    p["w4"], p["b4"] = linear(ks[10], ks[11], ENC_SHAPE, IN_TWO)
    k2 = jax.random.split(jax.random.fold_in(key, 77), 4)
    p["w5"], p["b5"] = linear(k2[0], k2[1], IN_TWO, IN_ONE)
    p["w6"], p["b6"] = linear(k2[2], k2[3], IN_ONE, IN_SHAPE)
    return p


def reference_forward(x, p):
    """Pure-JAX reference with the UN-fused BatchNorm (validates the folding too)."""
    h = jax.nn.sigmoid(x @ p["w1"] + p["b1"])
    h = jax.nn.sigmoid(h @ p["w2"] + p["b2"])
    z = h @ p["w3"] + p["b3"]
    z = (z - p["mean"]) * jax.lax.rsqrt(p["var"] + BN_EPS) * p["gamma"] + p["beta"]
    h = jax.nn.sigmoid(z @ p["w4"] + p["b4"])
    h = jax.nn.sigmoid(h @ p["w5"] + p["b5"])
    return h @ p["w6"] + p["b6"]


if __name__ == "__main__":
    key = jax.random.PRNGKey(0)
    kx, kp = jax.random.split(key)
    # inputs in [0, 1] to mimic MinMaxScaler-transformed data
    x = jax.random.uniform(kx, (BATCH, IN_SHAPE), jnp.float32)
    params = init_params(kp)

    out = autoencoder_forward(x, params)
    out = jax.block_until_ready(out)

    ref = reference_forward(x, params)
    assert out.shape == (BATCH, IN_SHAPE)
    assert jnp.allclose(out, ref, atol=1e-5, rtol=1e-5)
    print("KERNEL_OK")
</pallas_src>

<mosaic_0001>
module attributes {stable_mosaic.version = 11 : i64} {
  func.func @_ae_kernel(%arg0: i32, %arg1: memref<16x32xf32, #tpu.memory_space<vmem>>, %arg2: memref<32x64xf32, #tpu.memory_space<vmem>>, %arg3: memref<64x48xf32, #tpu.memory_space<vmem>>, %arg4: memref<48x8xf32, #tpu.memory_space<vmem>>, %arg5: memref<8x48xf32, #tpu.memory_space<vmem>>, %arg6: memref<48x64xf32, #tpu.memory_space<vmem>>, %arg7: memref<64x32xf32, #tpu.memory_space<vmem>>, %arg8: memref<8x128xf32, #tpu.memory_space<vmem>>, %arg9: memref<16x32xf32, #tpu.memory_space<vmem>>) attributes {dimension_semantics = [#tpu.dimension_semantics<arbitrary>], iteration_bounds = array<i64: 1>, scalar_prefetch = 0 : i64, scratch_operands = 0 : i64, tpu.core_type = #tpu.core_type<tc>, window_params = [{pipeline_mode = #tpu.pipeline_mode<synchronous>, transform_indices = @transform_0, window_bounds = array<i64: 16, 32>}, {pipeline_mode = #tpu.pipeline_mode<synchronous>, transform_indices = @transform_1, window_bounds = array<i64: 32, 64>}, {pipeline_mode = #tpu.pipeline_mode<synchronous>, transform_indices = @transform_2, window_bounds = array<i64: 64, 48>}, {pipeline_mode = #tpu.pipeline_mode<synchronous>, transform_indices = @transform_3, window_bounds = array<i64: 48, 8>}, {pipeline_mode = #tpu.pipeline_mode<synchronous>, transform_indices = @transform_4, window_bounds = array<i64: 8, 48>}, {pipeline_mode = #tpu.pipeline_mode<synchronous>, transform_indices = @transform_5, window_bounds = array<i64: 48, 64>}, {pipeline_mode = #tpu.pipeline_mode<synchronous>, transform_indices = @transform_6, window_bounds = array<i64: 64, 32>}, {pipeline_mode = #tpu.pipeline_mode<synchronous>, transform_indices = @transform_7, window_bounds = array<i64: 8, 128>}, {pipeline_mode = #tpu.pipeline_mode<synchronous>, transform_indices = @transform_8, window_bounds = array<i64: 16, 32>}]} {
    %c0 = arith.constant 0 : index
    %c0_0 = arith.constant 0 : index
    %0 = vector.load %arg1[%c0, %c0_0] : memref<16x32xf32, #tpu.memory_space<vmem>>, vector<16x32xf32>
    %c0_1 = arith.constant 0 : index
    %c0_2 = arith.constant 0 : index
    %1 = vector.load %arg8[%c0_1, %c0_2] : memref<8x128xf32, #tpu.memory_space<vmem>>, vector<8x128xf32>
    %c0_3 = arith.constant 0 : index
    %c0_4 = arith.constant 0 : index
    %2 = vector.load %arg2[%c0_3, %c0_4] : memref<32x64xf32, #tpu.memory_space<vmem>>, vector<32x64xf32>
    %cst = arith.constant dense<0.000000e+00> : vector<16x64xf32>
    %3 = tpu.matmul %0, %2, %cst {dimension_numbers = #tpu.dot_dimension_numbers<[1], [0], [0], [1], [0, 0, 1, 1], [], []>} : vector<16x32xf32>, vector<32x64xf32>, vector<16x64xf32> -> vector<16x64xf32>
    %4 = vector.extract_strided_slice %1 {offsets = [0, 0], sizes = [1, 64], strides = [1, 1]} : vector<8x128xf32> to vector<1x64xf32>
    %5 = vector.broadcast %4 : vector<1x64xf32> to vector<16x64xf32>
    %6 = arith.addf %3, %5 : vector<16x64xf32>
    %7 = arith.negf %6 : vector<16x64xf32>
    %8 = math.exp %7 : vector<16x64xf32>
    %cst_5 = arith.constant 1.000000e+00 : f32
    %9 = vector.broadcast %cst_5 : f32 to vector<16x64xf32>
    %10 = arith.addf %9, %8 : vector<16x64xf32>
    %11 = arith.divf %9, %10 : vector<16x64xf32>
    %c0_6 = arith.constant 0 : index
    %c0_7 = arith.constant 0 : index
    %12 = vector.load %arg3[%c0_6, %c0_7] : memref<64x48xf32, #tpu.memory_space<vmem>>, vector<64x48xf32>
    %cst_8 = arith.constant dense<0.000000e+00> : vector<16x48xf32>
    %13 = tpu.matmul %11, %12, %cst_8 {dimension_numbers = #tpu.dot_dimension_numbers<[1], [0], [0], [1], [0, 0, 1, 1], [], []>} : vector<16x64xf32>, vector<64x48xf32>, vector<16x48xf32> -> vector<16x48xf32>
    %14 = vector.extract_strided_slice %1 {offsets = [1, 0], sizes = [1, 48], strides = [1, 1]} : vector<8x128xf32> to vector<1x48xf32>
    %15 = vector.broadcast %14 : vector<1x48xf32> to vector<16x48xf32>
    %16 = arith.addf %13, %15 : vector<16x48xf32>
    %17 = arith.negf %16 : vector<16x48xf32>
    %18 = math.exp %17 : vector<16x48xf32>
    %cst_9 = arith.constant 1.000000e+00 : f32
    %19 = vector.broadcast %cst_9 : f32 to vector<16x48xf32>
    %20 = arith.addf %19, %18 : vector<16x48xf32>
    %21 = arith.divf %19, %20 : vector<16x48xf32>
    %c0_10 = arith.constant 0 : index
    %c0_11 = arith.constant 0 : index
    %22 = vector.load %arg4[%c0_10, %c0_11] : memref<48x8xf32, #tpu.memory_space<vmem>>, vector<48x8xf32>
    %cst_12 = arith.constant dense<0.000000e+00> : vector<16x8xf32>
    %23 = tpu.matmul %21, %22, %cst_12 {dimension_numbers = #tpu.dot_dimension_numbers<[1], [0], [0], [1], [0, 0, 1, 1], [], []>} : vector<16x48xf32>, vector<48x8xf32>, vector<16x8xf32> -> vector<16x8xf32>
    %24 = vector.extract_strided_slice %1 {offsets = [2, 0], sizes = [1, 8], strides = [1, 1]} : vector<8x128xf32> to vector<1x8xf32>
    %25 = vector.broadcast %24 : vector<1x8xf32> to vector<16x8xf32>
    %26 = arith.addf %23, %25 : vector<16x8xf32>
    %c0_13 = arith.constant 0 : index
    %c0_14 = arith.constant 0 : index
    %27 = vector.load %arg5[%c0_13, %c0_14] : memref<8x48xf32, #tpu.memory_space<vmem>>, vector<8x48xf32>
    %cst_15 = arith.constant dense<0.000000e+00> : vector<16x48xf32>
    %28 = tpu.matmul %26, %27, %cst_15 {dimension_numbers = #tpu.dot_dimension_numbers<[1], [0], [0], [1], [0, 0, 1, 1], [], []>} : vector<16x8xf32>, vector<8x48xf32>, vector<16x48xf32> -> vector<16x48xf32>
    %29 = vector.extract_strided_slice %1 {offsets = [3, 0], sizes = [1, 48], strides = [1, 1]} : vector<8x128xf32> to vector<1x48xf32>
    %30 = vector.broadcast %29 : vector<1x48xf32> to vector<16x48xf32>
    %31 = arith.addf %28, %30 : vector<16x48xf32>
    %32 = arith.negf %31 : vector<16x48xf32>
    %33 = math.exp %32 : vector<16x48xf32>
    %cst_16 = arith.constant 1.000000e+00 : f32
    %34 = vector.broadcast %cst_16 : f32 to vector<16x48xf32>
    %35 = arith.addf %34, %33 : vector<16x48xf32>
    %36 = arith.divf %34, %35 : vector<16x48xf32>
    %c0_17 = arith.constant 0 : index
    %c0_18 = arith.constant 0 : index
    %37 = vector.load %arg6[%c0_17, %c0_18] : memref<48x64xf32, #tpu.memory_space<vmem>>, vector<48x64xf32>
    %cst_19 = arith.constant dense<0.000000e+00> : vector<16x64xf32>
    %38 = tpu.matmul %36, %37, %cst_19 {dimension_numbers = #tpu.dot_dimension_numbers<[1], [0], [0], [1], [0, 0, 1, 1], [], []>} : vector<16x48xf32>, vector<48x64xf32>, vector<16x64xf32> -> vector<16x64xf32>
    %39 = vector.extract_strided_slice %1 {offsets = [4, 0], sizes = [1, 64], strides = [1, 1]} : vector<8x128xf32> to vector<1x64xf32>
    %40 = vector.broadcast %39 : vector<1x64xf32> to vector<16x64xf32>
    %41 = arith.addf %38, %40 : vector<16x64xf32>
    %42 = arith.negf %41 : vector<16x64xf32>
    %43 = math.exp %42 : vector<16x64xf32>
    %cst_20 = arith.constant 1.000000e+00 : f32
    %44 = vector.broadcast %cst_20 : f32 to vector<16x64xf32>
    %45 = arith.addf %44, %43 : vector<16x64xf32>
    %46 = arith.divf %44, %45 : vector<16x64xf32>
    %c0_21 = arith.constant 0 : index
    %c0_22 = arith.constant 0 : index
    %47 = vector.load %arg7[%c0_21, %c0_22] : memref<64x32xf32, #tpu.memory_space<vmem>>, vector<64x32xf32>
    %cst_23 = arith.constant dense<0.000000e+00> : vector<16x32xf32>
    %48 = tpu.matmul %46, %47, %cst_23 {dimension_numbers = #tpu.dot_dimension_numbers<[1], [0], [0], [1], [0, 0, 1, 1], [], []>} : vector<16x64xf32>, vector<64x32xf32>, vector<16x32xf32> -> vector<16x32xf32>
    %49 = vector.extract_strided_slice %1 {offsets = [5, 0], sizes = [1, 32], strides = [1, 1]} : vector<8x128xf32> to vector<1x32xf32>
    %50 = vector.broadcast %49 : vector<1x32xf32> to vector<16x32xf32>
    %51 = arith.addf %48, %50 : vector<16x32xf32>
    %c0_24 = arith.constant 0 : index
    %c0_25 = arith.constant 0 : index
    %52 = vector.load %arg9[%c0_24, %c0_25] : memref<16x32xf32, #tpu.memory_space<vmem>>, vector<16x32xf32>
    tpu.vector_store %arg9[%c0_24, %c0_25], %51 {strides = array<i32>} : memref<16x32xf32, #tpu.memory_space<vmem>>, vector<16x32xf32>,
    return
  }
  func.func @transform_0(%arg0: i32) -> (i32, i32) {
    %c0_i32 = arith.constant 0 : i32
    %c0_i32_0 = arith.constant 0 : i32
    %c0_i32_1 = arith.constant 0 : i32
    return %c0_i32, %c0_i32_0 : i32, i32
  }
  func.func @transform_1(%arg0: i32) -> (i32, i32) {
    %c0_i32 = arith.constant 0 : i32
    %c0_i32_0 = arith.constant 0 : i32
    %c0_i32_1 = arith.constant 0 : i32
    return %c0_i32, %c0_i32_0 : i32, i32
  }
  func.func @transform_2(%arg0: i32) -> (i32, i32) {
    %c0_i32 = arith.constant 0 : i32
    %c0_i32_0 = arith.constant 0 : i32
    %c0_i32_1 = arith.constant 0 : i32
    return %c0_i32, %c0_i32_0 : i32, i32
  }
  func.func @transform_3(%arg0: i32) -> (i32, i32) {
    %c0_i32 = arith.constant 0 : i32
    %c0_i32_0 = arith.constant 0 : i32
    %c0_i32_1 = arith.constant 0 : i32
    return %c0_i32, %c0_i32_0 : i32, i32
  }
  func.func @transform_4(%arg0: i32) -> (i32, i32) {
    %c0_i32 = arith.constant 0 : i32
    %c0_i32_0 = arith.constant 0 : i32
    %c0_i32_1 = arith.constant 0 : i32
    return %c0_i32, %c0_i32_0 : i32, i32
  }
  func.func @transform_5(%arg0: i32) -> (i32, i32) {
    %c0_i32 = arith.constant 0 : i32
    %c0_i32_0 = arith.constant 0 : i32
    %c0_i32_1 = arith.constant 0 : i32
    return %c0_i32, %c0_i32_0 : i32, i32
  }
  func.func @transform_6(%arg0: i32) -> (i32, i32) {
    %c0_i32 = arith.constant 0 : i32
    %c0_i32_0 = arith.constant 0 : i32
    %c0_i32_1 = arith.constant 0 : i32
    return %c0_i32, %c0_i32_0 : i32, i32
  }
  func.func @transform_7(%arg0: i32) -> (i32, i32) {
    %c0_i32 = arith.constant 0 : i32
    %c0_i32_0 = arith.constant 0 : i32
    %c0_i32_1 = arith.constant 0 : i32
    return %c0_i32, %c0_i32_0 : i32, i32
  }
  func.func @transform_8(%arg0: i32) -> (i32, i32) {
    %c0_i32 = arith.constant 0 : i32
    %c0_i32_0 = arith.constant 0 : i32
    %c0_i32_1 = arith.constant 0 : i32
    return %c0_i32, %c0_i32_0 : i32, i32
  }
}

</mosaic_0001>

<llo_original>
// kernel: tpu_custom_call.1
$region0: #{tpu_custom_call.1}
  #allocation0 [shape = 'u32[]', space=smem, size = 0x4, offset = 0x4, fixed_abs, tag = 'smem constant byte address 0x4 - core index']
  #allocation1 [shape = 'u32[72,128]{1,0:T(1,128)}', space=vmem, size = 0x9000, scoped, tag = 'internal scratch']
  %s0 = inlined_call_operand.vmem [shape: f32[16,32], index: 0, kind: input, shape index: {}]
  %s1 = inlined_call_operand.vmem [shape: f32[32,64], index: 1, kind: input, shape index: {}]
  %s2 = inlined_call_operand.vmem [shape: f32[64,48], index: 2, kind: input, shape index: {}]
  %s3 = inlined_call_operand.vmem [shape: f32[48,8], index: 3, kind: input, shape index: {}]
  %s4 = inlined_call_operand.vmem [shape: f32[8,48], index: 4, kind: input, shape index: {}]
  %s5 = inlined_call_operand.vmem [shape: f32[48,64], index: 5, kind: input, shape index: {}]
  %s6 = inlined_call_operand.vmem [shape: f32[64,32], index: 6, kind: input, shape index: {}]
  %s7 = inlined_call_operand.vmem [shape: f32[8,128], index: 7, kind: input, shape index: {}]
  %s8 = inlined_call_operand.hbm [shape: f32[16,32], index: 8, kind: output, shape index: {}]
  %s9 = sld [smem:[#allocation0]]
  $region42: #{tpu_custom_call.1} parent=0
    _
  %s11 = ssub.s32 1, %s9
  %s12 = scalar_select 0, %s11, %s9
  $region1: #{tpu_custom_call.1} parent=0
    #allocation2 [shape = 'u8[8192]{0}', space=vmem, size = 0x2000, scoped, tag = 'output window, operand 0, single buffered']
    #allocation3 [shape = 's32[1]{0}', space=sflag, size = 0x4, scoped, tag = 'scoped memory for tpu_custom_call.1']
    %13 = vsyncpa [#allocation3], 0
    // Predicated region
    $region2: #{tpu_custom_call.1} parent=1 // pred_check
      _
    $region3: #{tpu_custom_call.1} parent=1 // pred_check_branch
      %15 = sbr.rel (0) target = $region5
    $region4: #{tpu_custom_call.1} parent=1 // pred_region
      _
    $region5: #{tpu_custom_call.1} parent=1 // pred_fallthru
      _
    // Predicated region
    $region6: #{tpu_custom_call.1} parent=1 // pred_check
      _
    $region7: #{tpu_custom_call.1} parent=1 // pred_check_branch
      %17 = sbr.rel (0) target = $region9
    $region8: #{tpu_custom_call.1} parent=1 // pred_region
      _
    $region9: #{tpu_custom_call.1} parent=1 // pred_fallthru
      _
    // Predicated region
    $region10: #{tpu_custom_call.1} parent=1 // pred_check
      _
    $region11: #{tpu_custom_call.1} parent=1 // pred_check_branch
      %19 = sbr.rel (0) target = $region13
    $region12: #{tpu_custom_call.1} parent=1 // pred_region
      _
    $region13: #{tpu_custom_call.1} parent=1 // pred_fallthru
      _
    // Predicated region
    $region14: #{tpu_custom_call.1} parent=1 // pred_check
      _
    $region15: #{tpu_custom_call.1} parent=1 // pred_check_branch
      %21 = sbr.rel (0) target = $region17
    $region16: #{tpu_custom_call.1} parent=1 // pred_region
      _
    $region17: #{tpu_custom_call.1} parent=1 // pred_fallthru
      _
    // Predicated region
    $region18: #{tpu_custom_call.1} parent=1 // pred_check
      _
    $region19: #{tpu_custom_call.1} parent=1 // pred_check_branch
      %23 = sbr.rel (0) target = $region21
    $region20: #{tpu_custom_call.1} parent=1 // pred_region
      _
    $region21: #{tpu_custom_call.1} parent=1 // pred_fallthru
      _
    // Predicated region
    $region22: #{tpu_custom_call.1} parent=1 // pred_check
      _
    $region23: #{tpu_custom_call.1} parent=1 // pred_check_branch
      %25 = sbr.rel (0) target = $region25
    $region24: #{tpu_custom_call.1} parent=1 // pred_region
      _
    $region25: #{tpu_custom_call.1} parent=1 // pred_fallthru
      _
    // Predicated region
    $region26: #{tpu_custom_call.1} parent=1 // pred_check
      _
    $region27: #{tpu_custom_call.1} parent=1 // pred_check_branch
      %27 = sbr.rel (0) target = $region29
    $region28: #{tpu_custom_call.1} parent=1 // pred_region
      _
    $region29: #{tpu_custom_call.1} parent=1 // pred_fallthru
      _
    // Predicated region
    $region30: #{tpu_custom_call.1} parent=1 // pred_check
      _
    $region31: #{tpu_custom_call.1} parent=1 // pred_check_branch
      %29 = sbr.rel (0) target = $region33
    $region32: #{tpu_custom_call.1} parent=1 // pred_region
      _
    $region33: #{tpu_custom_call.1} parent=1 // pred_fallthru
      _
    %v30 = vld [vmem:[%s0] sm:$0xff]
    %v31 = vld [vmem:[%s0 + $0x8] sm:$0xff]
    %v32 = vld [vmem:[%s7] sm:$0xff]
    %v33 = vld [vmem:[%s1] sm:$0xff]
    %v34 = vld [vmem:[%s1 + $0x8] sm:$0xff]
    %v35 = vld [vmem:[%s1 + $0x10] sm:$0xff]
    %v36 = vld [vmem:[%s1 + $0x18] sm:$0xff]
    %v37 = vperm.slane %v32, 0
    %vm38 = vcmask 261120
    %v40 = vsel %vm38, %v30, 0
    %v43 = vsel %vm38, %v31, 0
    %45 = vmatpush.msra.mxu0 0.0
    %46 = vmatpush.msra.mxu0 0.0
    %47 = vmatpush.msra.mxu0 0.0
    %48 = vmatpush.msra.mxu0 0.0
    %49 = vmatpush.msra.mxu0 0.0
    %50 = vmatpush.msra.mxu0 0.0
    %51 = vmatpush.msra.mxu0 0.0
    %52 = vmatpush.msra.mxu0 0.0
    %53 = vmatpush.msra.mxu0 0.0
    %54 = vmatpush.msra.mxu0 0.0
    %55 = vmatpush.msra.mxu0 0.0
    %56 = vmatpush.msra.mxu0 0.0
    %57 = vmatpush.msra.mxu0 %v36
    %58 = vmatpush.msra.mxu0 %v35
    %59 = vmatpush.msra.mxu0 %v34
    %60 = vmatpush.msra.mxu0 %v33
    %61 = vmatmul.f32.gmra.mxu0 %v40
    %v62 = vpop.f32.mrf.mxu0
    %v63 = vadd.f32 %v37, %v62
    %64 = vmatmul.f32.gmra.mxu0 %v43
    %v65 = vpop.f32.mrf.mxu0
    %v66 = vadd.f32 %v37, %v65
    %67 = vdwg.mxu0
    %v68 = vxor.u32 %v63, 2147483648
    %v69 = vxor.u32 %v66, 2147483648
    %v70 = vmul.f32 %v68, 1.442695
    %v71 = vpow.pop %v70
    %v72 = vmul.f32 %v69, 1.442695
    %v73 = vpow.pop %v72
    %v74 = vadd.f32 %v71, 1.0
    %v75 = vadd.f32 %v73, 1.0
    %v76 = vrcp.pop %v74
    %v77 = vmul.f32 %v74, %v76
    %v78 = vsub.f32 1.0, %v77
    %v79 = vmul.f32 %v76, %v78
    %v80 = vadd.f32 %v76, %v79
    %vm81 = vweird.f32 %v74
    %vm82 = vweird.f32 %v76
    %vm83 = vmor %vm81, %vm82
    %v84 = vsel %vm83, %v76, %v80
    %v85 = vand.u32 2147483647, %v74
    %vm86 = vcmp.eq.f32.partialorder %v85, 8.507059e+37
    %v87 = vand.u32 %v74, 2147483648
    %v88 = vor.u32 1.1754944e-38, %v87
    %v89 = vsel %vm86, %v88, %v84
    %v90 = vmul.f32 1.0, %v89
    %v91 = vrcp.pop %v75
    %v92 = vmul.f32 %v75, %v91
    %v93 = vsub.f32 1.0, %v92
    %v94 = vmul.f32 %v91, %v93
    %v95 = vadd.f32 %v91, %v94
    %vm96 = vweird.f32 %v75
    %vm97 = vweird.f32 %v91
    %vm98 = vmor %vm96, %vm97
    %v99 = vsel %vm98, %v91, %v95
    %v100 = vand.u32 2147483647, %v75
    %vm101 = vcmp.eq.f32.partialorder %v100, 8.507059e+37
    %v102 = vand.u32 %v75, 2147483648
    %v103 = vor.u32 1.1754944e-38, %v102
    %v104 = vsel %vm101, %v103, %v99
    %v105 = vmul.f32 1.0, %v104
    %v106 = vld [vmem:[%s2] sm:$0xff]
    %v107 = vld [vmem:[%s2 + $0x8] sm:$0xff]
    %v108 = vld [vmem:[%s2 + $0x10] sm:$0xff]
    %v109 = vld [vmem:[%s2 + $0x18] sm:$0xff]
    %v110 = vld [vmem:[%s2 + $0x20] sm:$0xff]
    %v111 = vld [vmem:[%s2 + $0x28] sm:$0xff]
    %v112 = vld [vmem:[%s2 + $0x30] sm:$0xff]
    %v113 = vld [vmem:[%s2 + $0x38] sm:$0xff]
    %v114 = vperm.slane %v32, 1
    %vm115 = vcmask 523264
    %v117 = vsel %vm115, %v90, 0
    %v120 = vsel %vm115, %v105, 0
    %122 = vmatpush.msra.mxu0 0.0
    %123 = vmatpush.msra.mxu0 0.0
    %124 = vmatpush.msra.mxu0 0.0
    %125 = vmatpush.msra.mxu0 0.0
    %126 = vmatpush.msra.mxu0 0.0
    %127 = vmatpush.msra.mxu0 0.0
    %128 = vmatpush.msra.mxu0 0.0
    %129 = vmatpush.msra.mxu0 0.0
    %130 = vmatpush.msra.mxu0 %v113
    %131 = vmatpush.msra.mxu0 %v112
    %132 = vmatpush.msra.mxu0 %v111
    %133 = vmatpush.msra.mxu0 %v110
    %134 = vmatpush.msra.mxu0 %v109
    %135 = vmatpush.msra.mxu0 %v108
    %136 = vmatpush.msra.mxu0 %v107
    %137 = vmatpush.msra.mxu0 %v106
    %138 = vmatmul.f32.gmra.mxu0 %v117
    %v139 = vpop.f32.mrf.mxu0
    %v140 = vadd.f32 %v114, %v139
    %141 = vmatmul.f32.gmra.mxu0 %v120
    %v142 = vpop.f32.mrf.mxu0
    %v143 = vadd.f32 %v114, %v142
    %144 = vdwg.mxu0
    %v145 = vxor.u32 %v140, 2147483648
    %v146 = vxor.u32 %v143, 2147483648
    %v147 = vmul.f32 %v145, 1.442695
    %v148 = vpow.pop %v147
    %v149 = vmul.f32 %v146, 1.442695
    %v150 = vpow.pop %v149
    %v151 = vadd.f32 %v148, 1.0
    %v152 = vadd.f32 %v150, 1.0
    %v153 = vrcp.pop %v151
    %v154 = vmul.f32 %v151, %v153
    %v155 = vsub.f32 1.0, %v154
    %v156 = vmul.f32 %v153, %v155
    %v157 = vadd.f32 %v153, %v156
    %vm158 = vweird.f32 %v151
    %vm159 = vweird.f32 %v153
    %vm160 = vmor %vm158, %vm159
    %v161 = vsel %vm160, %v153, %v157
    %v162 = vand.u32 2147483647, %v151
    %vm163 = vcmp.eq.f32.partialorder %v162, 8.507059e+37
    %v164 = vand.u32 %v151, 2147483648
    %v165 = vor.u32 1.1754944e-38, %v164
    %v166 = vsel %vm163, %v165, %v161
    %v167 = vmul.f32 1.0, %v166
    %v168 = vrcp.pop %v152
    %v169 = vmul.f32 %v152, %v168
    %v170 = vsub.f32 1.0, %v169
    %v171 = vmul.f32 %v168, %v170
    %v172 = vadd.f32 %v168, %v171
    %vm173 = vweird.f32 %v152
    %vm174 = vweird.f32 %v168
    %vm175 = vmor %vm173, %vm174
    %v176 = vsel %vm175, %v168, %v172
    %v177 = vand.u32 2147483647, %v152
    %vm178 = vcmp.eq.f32.partialorder %v177, 8.507059e+37
    %v179 = vand.u32 %v152, 2147483648
    %v180 = vor.u32 1.1754944e-38, %v179
    %v181 = vsel %vm178, %v180, %v176
    %v182 = vmul.f32 1.0, %v181
    %v183 = vld [vmem:[%s3] sm:$0xff]
    %v184 = vld [vmem:[%s3 + $0x8] sm:$0xff]
    %v185 = vld [vmem:[%s3 + $0x10] sm:$0xff]
    %v186 = vld [vmem:[%s3 + $0x18] sm:$0xff]
    %v187 = vld [vmem:[%s3 + $0x20] sm:$0xff]
    %v188 = vld [vmem:[%s3 + $0x28] sm:$0xff]
    %v189 = vperm.slane %v32, 2
    %vm190 = vcmask 392192
    %v192 = vsel %vm190, %v167, 0
    %v195 = vsel %vm190, %v182, 0
    %197 = vmatpush.msra.mxu0 0.0
    %198 = vmatpush.msra.mxu0 0.0
    %199 = vmatpush.msra.mxu0 0.0
    %200 = vmatpush.msra.mxu0 0.0
    %201 = vmatpush.msra.mxu0 0.0
    %202 = vmatpush.msra.mxu0 0.0
    %203 = vmatpush.msra.mxu0 0.0
    %204 = vmatpush.msra.mxu0 0.0
    %205 = vmatpush.msra.mxu0 0.0
    %206 = vmatpush.msra.mxu0 0.0
    %207 = vmatpush.msra.mxu0 %v188
    %208 = vmatpush.msra.mxu0 %v187
    %209 = vmatpush.msra.mxu0 %v186
    %210 = vmatpush.msra.mxu0 %v185
    %211 = vmatpush.msra.mxu0 %v184
    %212 = vmatpush.msra.mxu0 %v183
    %213 = vmatmul.f32.gmra.mxu0 %v192
    %v214 = vpop.f32.mrf.mxu0
    %v215 = vadd.f32 %v189, %v214
    %216 = vmatmul.f32.gmra.mxu0 %v195
    %v217 = vpop.f32.mrf.mxu0
    %v218 = vadd.f32 %v189, %v217
    %219 = vdwg.mxu0
    %v220 = vld [vmem:[%s4] sm:$0xff]
    %v221 = vperm.slane %v32, 3
    %vm222 = vcmask 64512
    %v224 = vsel %vm222, %v215, 0
    %v227 = vsel %vm222, %v218, 0
    %229 = vmatpush.msra.mxu0 0.0
    %230 = vmatpush.msra.mxu0 0.0
    %231 = vmatpush.msra.mxu0 0.0
    %232 = vmatpush.msra.mxu0 0.0
    %233 = vmatpush.msra.mxu0 0.0
    %234 = vmatpush.msra.mxu0 0.0
    %235 = vmatpush.msra.mxu0 0.0
    %236 = vmatpush.msra.mxu0 0.0
    %237 = vmatpush.msra.mxu0 0.0
    %238 = vmatpush.msra.mxu0 0.0
    %239 = vmatpush.msra.mxu0 0.0
    %240 = vmatpush.msra.mxu0 0.0
    %241 = vmatpush.msra.mxu0 0.0
    %242 = vmatpush.msra.mxu0 0.0
    %243 = vmatpush.msra.mxu0 0.0
    %244 = vmatpush.msra.mxu0 %v220
    %245 = vmatmul.f32.gmra.mxu0 %v224
    %v246 = vpop.f32.mrf.mxu0
    %v247 = vadd.f32 %v221, %v246
    %248 = vmatmul.f32.gmra.mxu0 %v227
    %v249 = vpop.f32.mrf.mxu0
    %v250 = vadd.f32 %v221, %v249
    %251 = vdwg.mxu0
    %v252 = vxor.u32 %v247, 2147483648
    %v253 = vxor.u32 %v250, 2147483648
    %v254 = vmul.f32 %v252, 1.442695
    %v255 = vpow.pop %v254
    %v256 = vmul.f32 %v253, 1.442695
    %v257 = vpow.pop %v256
    %v258 = vadd.f32 %v255, 1.0
    %v259 = vadd.f32 %v257, 1.0
    %v260 = vrcp.pop %v258
    %v261 = vmul.f32 %v258, %v260
    %v262 = vsub.f32 1.0, %v261
    %v263 = vmul.f32 %v260, %v262
    %v264 = vadd.f32 %v260, %v263
    %vm265 = vweird.f32 %v258
    %vm266 = vweird.f32 %v260
    %vm267 = vmor %vm265, %vm266
    %v268 = vsel %vm267, %v260, %v264
    %v269 = vand.u32 2147483647, %v258
    %vm270 = vcmp.eq.f32.partialorder %v269, 8.507059e+37
    %v271 = vand.u32 %v258, 2147483648
    %v272 = vor.u32 1.1754944e-38, %v271
    %v273 = vsel %vm270, %v272, %v268
    %v274 = vmul.f32 1.0, %v273
    %v275 = vrcp.pop %v259
    %v276 = vmul.f32 %v259, %v275
    %v277 = vsub.f32 1.0, %v276
    %v278 = vmul.f32 %v275, %v277
    %v279 = vadd.f32 %v275, %v278
    %vm280 = vweird.f32 %v259
    %vm281 = vweird.f32 %v275
    %vm282 = vmor %vm280, %vm281
    %v283 = vsel %vm282, %v275, %v279
    %v284 = vand.u32 2147483647, %v259
    %vm285 = vcmp.eq.f32.partialorder %v284, 8.507059e+37
    %v286 = vand.u32 %v259, 2147483648
    %v287 = vor.u32 1.1754944e-38, %v286
    %v288 = vsel %vm285, %v287, %v283
    %v289 = vmul.f32 1.0, %v288
    %v290 = vld [vmem:[%s5] sm:$0xff]
    %v291 = vld [vmem:[%s5 + $0x8] sm:$0xff]
    %v292 = vld [vmem:[%s5 + $0x10] sm:$0xff]
    %v293 = vld [vmem:[%s5 + $0x18] sm:$0xff]
    %v294 = vld [vmem:[%s5 + $0x20] sm:$0xff]
    %v295 = vld [vmem:[%s5 + $0x28] sm:$0xff]
    %v296 = vperm.slane %v32, 4
    %v298 = vsel %vm190, %v274, 0
    %v301 = vsel %vm190, %v289, 0
    %303 = vmatpush.msra.mxu0 0.0
    %304 = vmatpush.msra.mxu0 0.0
    %305 = vmatpush.msra.mxu0 0.0
    %306 = vmatpush.msra.mxu0 0.0
    %307 = vmatpush.msra.mxu0 0.0
    %308 = vmatpush.msra.mxu0 0.0
    %309 = vmatpush.msra.mxu0 0.0
    %310 = vmatpush.msra.mxu0 0.0
    %311 = vmatpush.msra.mxu0 0.0
    %312 = vmatpush.msra.mxu0 0.0
    %313 = vmatpush.msra.mxu0 %v295
    %314 = vmatpush.msra.mxu0 %v294
    %315 = vmatpush.msra.mxu0 %v293
    %316 = vmatpush.msra.mxu0 %v292
    %317 = vmatpush.msra.mxu0 %v291
    %318 = vmatpush.msra.mxu0 %v290
    %319 = vmatmul.f32.gmra.mxu0 %v298
    %v320 = vpop.f32.mrf.mxu0
    %v321 = vadd.f32 %v296, %v320
    %322 = vmatmul.f32.gmra.mxu0 %v301
    %v323 = vpop.f32.mrf.mxu0
    %v324 = vadd.f32 %v296, %v323
    %325 = vdwg.mxu0
    %v326 = vxor.u32 %v321, 2147483648
    %v327 = vxor.u32 %v324, 2147483648
    %v328 = vmul.f32 %v326, 1.442695
    %v329 = vpow.pop %v328
    %v330 = vmul.f32 %v327, 1.442695
    %v331 = vpow.pop %v330
    %v332 = vadd.f32 %v329, 1.0
    %v333 = vadd.f32 %v331, 1.0
    %v334 = vrcp.pop %v332
    %v335 = vmul.f32 %v332, %v334
    %v336 = vsub.f32 1.0, %v335
    %v337 = vmul.f32 %v334, %v336
    %v338 = vadd.f32 %v334, %v337
    %vm339 = vweird.f32 %v332
    %vm340 = vweird.f32 %v334
    %vm341 = vmor %vm339, %vm340
    %v342 = vsel %vm341, %v334, %v338
    %v343 = vand.u32 2147483647, %v332
    %vm344 = vcmp.eq.f32.partialorder %v343, 8.507059e+37
    %v345 = vand.u32 %v332, 2147483648
    %v346 = vor.u32 1.1754944e-38, %v345
    %v347 = vsel %vm344, %v346, %v342
    %v348 = vmul.f32 1.0, %v347
    %v349 = vrcp.pop %v333
    %v350 = vmul.f32 %v333, %v349
    %v351 = vsub.f32 1.0, %v350
    %v352 = vmul.f32 %v349, %v351
    %v353 = vadd.f32 %v349, %v352
    %vm354 = vweird.f32 %v333
    %vm355 = vweird.f32 %v349
    %vm356 = vmor %vm354, %vm355
    %v357 = vsel %vm356, %v349, %v353
    %v358 = vand.u32 2147483647, %v333
    %vm359 = vcmp.eq.f32.partialorder %v358, 8.507059e+37
    %v360 = vand.u32 %v333, 2147483648
    %v361 = vor.u32 1.1754944e-38, %v360
    %v362 = vsel %vm359, %v361, %v357
    %v363 = vmul.f32 1.0, %v362
    %v364 = vld [vmem:[%s6] sm:$0xff]
    %v365 = vld [vmem:[%s6 + $0x8] sm:$0xff]
    %v366 = vld [vmem:[%s6 + $0x10] sm:$0xff]
    %v367 = vld [vmem:[%s6 + $0x18] sm:$0xff]
    %v368 = vld [vmem:[%s6 + $0x20] sm:$0xff]
    %v369 = vld [vmem:[%s6 + $0x28] sm:$0xff]
    %v370 = vld [vmem:[%s6 + $0x30] sm:$0xff]
    %v371 = vld [vmem:[%s6 + $0x38] sm:$0xff]
    %v372 = vperm.slane %v32, 5
    %v374 = vsel %vm115, %v348, 0
    %v377 = vsel %vm115, %v363, 0
    %379 = vmatpush.msra.mxu0 0.0
    %380 = vmatpush.msra.mxu0 0.0
    %381 = vmatpush.msra.mxu0 0.0
    %382 = vmatpush.msra.mxu0 0.0
    %383 = vmatpush.msra.mxu0 0.0
    %384 = vmatpush.msra.mxu0 0.0
    %385 = vmatpush.msra.mxu0 0.0
    %386 = vmatpush.msra.mxu0 0.0
    %387 = vmatpush.msra.mxu0 %v371
    %388 = vmatpush.msra.mxu0 %v370
    %389 = vmatpush.msra.mxu0 %v369
    %390 = vmatpush.msra.mxu0 %v368
    %391 = vmatpush.msra.mxu0 %v367
    %392 = vmatpush.msra.mxu0 %v366
    %393 = vmatpush.msra.mxu0 %v365
    %394 = vmatpush.msra.mxu0 %v364
    %395 = vmatmul.f32.gmra.mxu0 %v374
    %v396 = vpop.f32.mrf.mxu0
    %v397 = vadd.f32 %v372, %v396
    %398 = vmatmul.f32.gmra.mxu0 %v377
    %v399 = vpop.f32.mrf.mxu0
    %v400 = vadd.f32 %v372, %v399
    %401 = vdwg.mxu0
    %402 = vst.msk [vmem:[#allocation2] sm:$0xff] %vm38, %v397
    %403 = vst.msk [vmem:[#allocation2 + $0x8] sm:$0xff] %vm38, %v400
    // Predicated region
    $region34: #{tpu_custom_call.1} parent=1 // pred_check
      _
    $region35: #{tpu_custom_call.1} parent=1 // pred_check_branch
      %405 = sbr.rel (0) target = $region37
    $region36: #{tpu_custom_call.1} parent=1 // pred_region
      %407 = vsyncadd [#allocation3], 0
      %s408 = sshll.u32 [#allocation2], 4
      %s409 = int_to_ptr.vmem [resolvable:$true] %s408
      %s410 = sshll.u32 %s8, 4
      %s411 = int_to_ptr.hbm [resolvable:$true] %s410
      %416 = dma.vmem_to_hbm [thread:$0]  %s409, 256, %s411, [#allocation3], 128, 128, 8
    $region37: #{tpu_custom_call.1} parent=1 // pred_fallthru
      _
    // Predicated region
    $region38: #{tpu_custom_call.1} parent=1 // pred_check
      _
    $region39: #{tpu_custom_call.1} parent=1 // pred_check_branch
      %418 = sbr.rel (0) target = $region41
    $region40: #{tpu_custom_call.1} parent=1 // pred_region
      %420 = dma.done [#allocation3], 256
    $region41: #{tpu_custom_call.1} parent=1 // pred_fallthru
      _
    %421 = vsyncpa [#allocation3], 1

</llo_original>
